<compile_context>
chip_gen: v5e
topology: v5e:2x2
jax: 0.10.0
libtpu: 0.0.40
codegen_flags: <defaults>
</compile_context>

<pallas_src>
import functools

import jax
import jax.numpy as jnp
import numpy as np
from jax.experimental import pallas as pl
from jax.experimental.pallas import tpu as pltpu


# ---------------------------------------------------------------------------
# Kernel
# ---------------------------------------------------------------------------
def _node_model_kernel(n_hidden, fb_ref, nb_ref, x_ref, src_ref, ea_ref, *rest):
    """fb_ref/nb_ref (SMEM, scalar-prefetch): per-node-tile first edge block / #blocks.

    rest = (*param_refs, out_ref, acc_ref)
    param layout: [W0_x, W0_agg, b0, W1, b1, ..., Wn, bn]
      - weights are bf16, BN already folded in; biases are f32.
    """
    out_ref, acc_ref = rest[-2], rest[-1]
    params = rest[:-2]

    tn, _ = x_ref.shape          # node-tile rows, feature dim
    te = ea_ref.shape[0]         # edge-tile rows

    n = pl.program_id(0)
    e = pl.program_id(1)

    # ---- init accumulator at the start of this node tile's edge reduction -
    @pl.when(e == 0)
    def _():
        acc_ref[...] = jnp.zeros_like(acc_ref)

    # ---- segment-sum block: only this tile's own (sorted) edge blocks are
    # visited; padded steps (e >= nblk) skip compute and (via the clamped
    # index_map) trigger no new DMA.  One-hot is exact in bf16; padded edges
    # carry src == -1 and never match.
    @pl.when(e < nb_ref[n])
    def _():
        src_local = src_ref[...] - n * tn                          # [1, TE] int32 (cheap side)
        row_iota = jax.lax.broadcasted_iota(jnp.int32, (tn, te), 0)
        onehot = (row_iota == src_local).astype(jnp.bfloat16)      # [TN, TE]
        acc_ref[...] += jnp.dot(onehot, ea_ref[...],
                                preferred_element_type=jnp.float32)  # f32 accumulate

    # ---- finalize: run the (BN-folded) MLP and store the output block -----
    @pl.when(e == pl.num_programs(1) - 1)
    def _():
        x = x_ref[...].astype(jnp.bfloat16)          # cast only at the MXU boundary
        agg = acc_ref[...].astype(jnp.bfloat16)

        # First Linear over cat([x, agg], 1) as two K=D dots against the
        # host-split halves of W0 (== one K=2D dot mathematically).
        h = (jnp.dot(x, params[0][...], preferred_element_type=jnp.float32)
             + jnp.dot(agg, params[1][...], preferred_element_type=jnp.float32)
             + params[2][...])                        # f32

        for k in range(n_hidden):
            w = params[3 + 2 * k][...]                # bf16, BN folded in
            b = params[4 + 2 * k][...]                # f32
            # SiLU in f32 (VPU mul + EUP sigmoid); Dropout = identity (eval).
            h = h * jax.nn.sigmoid(h)
            h = jnp.dot(h.astype(jnp.bfloat16), w,
                        preferred_element_type=jnp.float32) + b

        out_ref[...] = h.astype(out_ref.dtype)


# ---------------------------------------------------------------------------
# Host-side helpers
# ---------------------------------------------------------------------------
def _round_up(v, m):
    return ((v + m - 1) // m) * m


def _fold_batchnorm(params, n_hidden, eps=1e-5):
    """Fold each inference BatchNorm1d into the following Linear.

    params layout: [W0, b0, g0, be0, rm0, rv0, W1, b1, ..., Wn, bn]
    returns:       [W0, b0, W1', b1', ..., Wn', bn']
    """
    params = [jnp.asarray(p, jnp.float32) for p in params]
    folded = [params[0], params[1]]
    idx = 2
    for _ in range(n_hidden):
        g, be, rm, rv = params[idx:idx + 4]
        w, b = params[idx + 4], params[idx + 5]
        idx += 6
        a = g * jax.lax.rsqrt(rv + eps)        # [1, D]  scale
        c = be - rm * a                        # [1, D]  shift
        folded.append(a.reshape(-1, 1) * w)    # row-scale next Linear's weight
        folded.append(b + c @ w)               # absorb shift into next bias
    return folded


def node_model_forward(x, edge_index, edge_attr, params, n_hidden,
                       *, node_tile=512, edge_tile=2048, bn_eps=1e-5):
    """edge_index must be concrete (the per-tile edge schedule is built on the host)."""
    N, D = x.shape
    E = edge_attr.shape[0]

    # --- host precompute: fold BN, split W0, cast weights to bf16 ----------
    folded = _fold_batchnorm(params, n_hidden, bn_eps)
    w0, b0 = folded[0], folded[1]
    kernel_params = [w0[:D].astype(jnp.bfloat16),      # x-part of first Linear
                     w0[D:].astype(jnp.bfloat16),      # agg-part of first Linear
                     b0.astype(jnp.float32)]
    for k in range(n_hidden):
        kernel_params.append(folded[2 + 2 * k].astype(jnp.bfloat16))
        kernel_params.append(folded[3 + 2 * k].astype(jnp.float32))

    # --- tile sizes: node tile multiple of 8 sublanes, edge tile multiple of
    # 128 lanes; TN*TE kept <= ~1M elements (v7x 64 MiB VMEM cap).
    TN = min(node_tile, _round_up(N, 8))
    # v7x megacore: keep at least 2 node tiles on the "parallel" axis.
    while TN > 8 and _round_up(N, TN) // TN < 2:
        TN = max(8, (TN // 2) // 8 * 8)
    TE = min(edge_tile, _round_up(E, 128))
    N_pad = _round_up(N, TN)
    E_pad = _round_up(E, TE)
    ntiles = N_pad // TN
    total_blocks = E_pad // TE

    # --- host schedule: sort edges by src, per-node-tile edge-block ranges --
    src_np = np.asarray(jax.device_get(edge_index))[0].astype(np.int64)
    order = np.argsort(src_np, kind="stable")
    src_sorted = src_np[order]
    tile_starts = np.arange(ntiles, dtype=np.int64) * TN
    lo = np.searchsorted(src_sorted, tile_starts, side="left")
    hi = np.searchsorted(src_sorted, tile_starts + TN, side="left")
    first_blk = np.clip(lo // TE, 0, total_blocks - 1).astype(np.int32)
    nblk = np.where(hi > lo, (-(-hi // TE)) - (lo // TE), 0).astype(np.int32)
    max_blocks = int(max(1, int(nblk.max())))
    fb = jnp.asarray(first_blk, jnp.int32)
    nb = jnp.asarray(nblk, jnp.int32)

    # --- device-side operands (sorted + padded) ------------------------------
    order_j = jnp.asarray(order, jnp.int32)
    x_p = jnp.zeros((N_pad, D), jnp.float32).at[:N].set(x.astype(jnp.float32))
    ea_p = jnp.zeros((E_pad, D), jnp.bfloat16).at[:E].set(
        jnp.take(edge_attr.astype(jnp.bfloat16), order_j, axis=0))
    src_p = jnp.full((1, E_pad), -1, jnp.int32).at[0, :E].set(
        jnp.asarray(src_sorted, jnp.int32))

    grid = (ntiles, max_blocks)   # (node tiles: parallel, this tile's edge blocks: reduction)

    def edge_blk(n, e, fb_r, nb_r):
        # clamp padded steps to the last real block of this tile -> no extra DMA
        return fb_r[n] + jnp.minimum(e, jnp.maximum(nb_r[n] - 1, 0))

    in_specs = (
        [pl.BlockSpec((TN, D), lambda n, e, fb_r, nb_r: (n, 0)),                          # x
         pl.BlockSpec((1, TE), lambda n, e, fb_r, nb_r: (0, edge_blk(n, e, fb_r, nb_r))),  # src
         pl.BlockSpec((TE, D), lambda n, e, fb_r, nb_r: (edge_blk(n, e, fb_r, nb_r), 0))]  # edge_attr
        + [pl.BlockSpec(p.shape, lambda n, e, fb_r, nb_r: (0, 0))                          # params
           for p in kernel_params])

    out = pl.pallas_call(
        functools.partial(_node_model_kernel, n_hidden),
        grid_spec=pltpu.PrefetchScalarGridSpec(
            num_scalar_prefetch=2,
            grid=grid,
            in_specs=in_specs,
            out_specs=pl.BlockSpec((TN, D), lambda n, e, fb_r, nb_r: (n, 0)),
            scratch_shapes=[pltpu.VMEM((TN, D), jnp.float32)]),      # agg accumulator
        out_shape=jax.ShapeDtypeStruct((N_pad, D), jnp.float32),
        compiler_params=pltpu.CompilerParams(
            dimension_semantics=("parallel", "arbitrary"),
            vmem_limit_bytes=48 * 1024 * 1024),   # headroom on v7x (64 MiB physical)
    )(fb, nb, x_p, src_p, ea_p, *kernel_params)

    return out[:N]


# ---------------------------------------------------------------------------
# References
# ---------------------------------------------------------------------------
def node_model_reference(x, edge_index, edge_attr, params, n_hidden):
    """Pure-JAX f32 reference mirroring the PyTorch forward (inference mode)."""
    N, D = x.shape
    src = edge_index[0]
    agg = jnp.zeros((N, D), jnp.float32).at[src].add(edge_attr.astype(jnp.float32))
    h = jnp.concatenate([x.astype(jnp.float32), agg], axis=1)
    idx = 0
    for k in range(n_hidden + 1):
        w, b = params[idx], params[idx + 1]
        idx += 2
        h = h @ w + b
        if k != n_hidden:
            h = h * jax.nn.sigmoid(h)
            g, be, rm, rv = params[idx:idx + 4]
            idx += 4
            h = (h - rm) * jax.lax.rsqrt(rv + 1e-5) * g + be
    return h


def node_model_matched_reference(x, edge_index, edge_attr, params, n_hidden, bn_eps=1e-5):
    """Reference mirroring the kernel's precision choices (bf16 MXU operands,
    f32 accumulation, BN folded into the next Linear)."""
    N, D = x.shape
    folded = _fold_batchnorm(params, n_hidden, bn_eps)
    src = edge_index[0]
    ea = edge_attr.astype(jnp.bfloat16).astype(jnp.float32)
    agg = jnp.zeros((N, D), jnp.float32).at[src].add(ea)

    def mm(a, w):
        return jnp.dot(a.astype(jnp.bfloat16), w.astype(jnp.bfloat16),
                       preferred_element_type=jnp.float32)

    w0, b0 = folded[0], folded[1]
    h = mm(x, w0[:D]) + mm(agg, w0[D:]) + b0
    for k in range(n_hidden):
        h = h * jax.nn.sigmoid(h)
        h = mm(h, folded[2 + 2 * k]) + folded[3 + 2 * k]
    return h


def make_params(key, dim_hidden, n_hidden):
    """Deterministic parameter init matching MLP([2D] + n_hidden*[D] + [D])."""
    D = dim_hidden
    layer_vec = [2 * D] + n_hidden * [D] + [D]
    params = []
    for k in range(len(layer_vec) - 1):
        key, kw, kb, kg, kbe, krm, krv = jax.random.split(key, 7)
        fan_in, fan_out = layer_vec[k], layer_vec[k + 1]
        w = jax.random.normal(kw, (fan_in, fan_out), jnp.float32) * (1.0 / np.sqrt(fan_in))
        b = 0.01 * jax.random.normal(kb, (1, fan_out), jnp.float32)
        params += [w, b]
        if k != len(layer_vec) - 2:
            gamma = 1.0 + 0.1 * jax.random.normal(kg, (1, fan_out), jnp.float32)
            beta = 0.05 * jax.random.normal(kbe, (1, fan_out), jnp.float32)
            rmean = 0.1 * jax.random.normal(krm, (1, fan_out), jnp.float32)
            rvar = 1.0 + 0.2 * jax.random.uniform(krv, (1, fan_out), jnp.float32)
            params += [gamma, beta, rmean, rvar]
    return params


# ---------------------------------------------------------------------------
# Main
# ---------------------------------------------------------------------------
if __name__ == "__main__":
    n_hidden = 2      # args.n_hidden
    dim_hidden = 32   # args.dim_hidden
    N, E = 16, 64     # nodes, edges

    key = jax.random.PRNGKey(0)
    k_x, k_e, k_src, k_dst, k_p, k_x2, k_e2, k_s2 = jax.random.split(key, 8)

    x = jax.random.normal(k_x, (N, dim_hidden), jnp.float32)
    edge_attr = jax.random.normal(k_e, (E, dim_hidden), jnp.float32)
    src = jax.random.randint(k_src, (E,), 0, N, jnp.int32)
    dst = jax.random.randint(k_dst, (E,), 0, N, jnp.int32)
    edge_index = jnp.stack([src, dst], axis=0)          # [2, E]

    params = make_params(k_p, dim_hidden, n_hidden)

    # --- run 1: module-sized problem (2 node tiles after megacore split) ----
    out = jax.block_until_ready(
        node_model_forward(x, edge_index, edge_attr, params, n_hidden))

    ref_matched = node_model_matched_reference(x, edge_index, edge_attr, params, n_hidden)
    np.testing.assert_allclose(np.asarray(out), np.asarray(ref_matched),
                               rtol=1e-3, atol=1e-3)
    ref_f32 = node_model_reference(x, edge_index, edge_attr, params, n_hidden)
    np.testing.assert_allclose(np.asarray(out), np.asarray(ref_f32),
                               rtol=5e-2, atol=5e-2)    # loose: kernel uses bf16 MXU ops

    # --- run 2: small tiles to exercise the full machinery (multiple node
    #            tiles, data-dependent edge-block ranges, clamped/padded edge
    #            steps, an empty node tile, padding on both axes) ------------
    N2, E2 = 24, 200
    x2 = jax.random.normal(k_x2, (N2, dim_hidden), jnp.float32)
    ea2 = jax.random.normal(k_e2, (E2, dim_hidden), jnp.float32)
    src2 = jax.random.randint(k_s2, (E2,), 8, N2, jnp.int32)   # nodes 0..7 get no edges
    ei2 = jnp.stack([src2, src2], axis=0)
    out2 = jax.block_until_ready(
        node_model_forward(x2, ei2, ea2, params, n_hidden, node_tile=8, edge_tile=128))
    ref2 = node_model_matched_reference(x2, ei2, ea2, params, n_hidden)
    np.testing.assert_allclose(np.asarray(out2), np.asarray(ref2), rtol=1e-3, atol=1e-3)

    print("KERNEL_OK")
</pallas_src>

<mosaic_0001>
module attributes {stable_mosaic.version = 11 : i64} {
  func.func @_node_model_kernel(%arg0: i32, %arg1: i32, %arg2: memref<2xi32, #tpu.memory_space<smem>>, %arg3: memref<2xi32, #tpu.memory_space<smem>>, %arg4: memref<8x32xf32, #tpu.memory_space<vmem>>, %arg5: memref<1x128xi32, #tpu.memory_space<vmem>>, %arg6: memref<128x32xbf16, #tpu.memory_space<vmem>>, %arg7: memref<32x32xbf16, #tpu.memory_space<vmem>>, %arg8: memref<32x32xbf16, #tpu.memory_space<vmem>>, %arg9: memref<1x32xf32, #tpu.memory_space<vmem>>, %arg10: memref<32x32xbf16, #tpu.memory_space<vmem>>, %arg11: memref<1x32xf32, #tpu.memory_space<vmem>>, %arg12: memref<32x32xbf16, #tpu.memory_space<vmem>>, %arg13: memref<1x32xf32, #tpu.memory_space<vmem>>, %arg14: memref<8x32xf32, #tpu.memory_space<vmem>>, %arg15: memref<8x32xf32, #tpu.memory_space<vmem>>) attributes {dimension_semantics = [#tpu.dimension_semantics<parallel>, #tpu.dimension_semantics<arbitrary>], iteration_bounds = array<i64: 2, 1>, scalar_prefetch = 2 : i64, scratch_operands = 1 : i64, tpu.core_type = #tpu.core_type<tc>, window_params = [{transform_indices = @transform_0, window_bounds = array<i64: 8, 32>}, {transform_indices = @transform_1, window_bounds = array<i64: 1, 128>}, {transform_indices = @transform_2, window_bounds = array<i64: 128, 32>}, {pipeline_mode = #tpu.pipeline_mode<synchronous>, transform_indices = @transform_3, window_bounds = array<i64: 32, 32>}, {pipeline_mode = #tpu.pipeline_mode<synchronous>, transform_indices = @transform_4, window_bounds = array<i64: 32, 32>}, {pipeline_mode = #tpu.pipeline_mode<synchronous>, transform_indices = @transform_5, window_bounds = array<i64: 1, 32>}, {pipeline_mode = #tpu.pipeline_mode<synchronous>, transform_indices = @transform_6, window_bounds = array<i64: 32, 32>}, {pipeline_mode = #tpu.pipeline_mode<synchronous>, transform_indices = @transform_7, window_bounds = array<i64: 1, 32>}, {pipeline_mode = #tpu.pipeline_mode<synchronous>, transform_indices = @transform_8, window_bounds = array<i64: 32, 32>}, {pipeline_mode = #tpu.pipeline_mode<synchronous>, transform_indices = @transform_9, window_bounds = array<i64: 1, 32>}, {transform_indices = @transform_10, window_bounds = array<i64: 8, 32>}]} {
    %c0_i32 = arith.constant 0 : i32
    %0 = arith.cmpi eq, %arg1, %c0_i32 : i32
    %1 = arith.extui %0 : i1 to i32
    %c0_i32_0 = arith.constant 0 : i32
    %2 = arith.cmpi ne, %1, %c0_i32_0 : i32
    scf.if %2 {
      %cst = arith.constant 0.000000e+00 : f32
      %11 = vector.broadcast %cst : f32 to vector<8x32xf32>
      %c0 = arith.constant 0 : index
      %c0_4 = arith.constant 0 : index
      %12 = vector.load %arg15[%c0, %c0_4] : memref<8x32xf32, #tpu.memory_space<vmem>>, vector<8x32xf32>
      tpu.vector_store %arg15[%c0, %c0_4], %11 {strides = array<i32>} : memref<8x32xf32, #tpu.memory_space<vmem>>, vector<8x32xf32>,
    } else {
    }
    %3 = arith.index_cast %arg0 : i32 to index
    %4 = memref.load %arg3[%3] : memref<2xi32, #tpu.memory_space<smem>>
    %5 = arith.cmpi slt, %arg1, %4 : i32
    %6 = arith.extui %5 : i1 to i32
    %c0_i32_1 = arith.constant 0 : i32
    %7 = arith.cmpi ne, %6, %c0_i32_1 : i32
    scf.if %7 {
      %c0 = arith.constant 0 : index
      %c0_4 = arith.constant 0 : index
      %11 = vector.load %arg5[%c0, %c0_4] : memref<1x128xi32, #tpu.memory_space<vmem>>, vector<1x128xi32>
      %c8_i32 = arith.constant 8 : i32
      %12 = arith.muli %arg0, %c8_i32 : i32
      %13 = vector.broadcast %12 : i32 to vector<1x128xi32>
      %14 = arith.subi %11, %13 : vector<1x128xi32>
      %15 = tpu.iota {dimensions = array<i32: 0>} : vector<8x128xi32>
      %16 = vector.broadcast %14 : vector<1x128xi32> to vector<8x128xi32>
      %17 = arith.cmpi eq, %15, %16 : vector<8x128xi32>
      %18 = arith.extui %17 : vector<8x128xi1> to vector<8x128xi32>
      %19 = arith.sitofp %18 : vector<8x128xi32> to vector<8x128xf32>
      %20 = arith.truncf %19 : vector<8x128xf32> to vector<8x128xbf16>
      %c0_5 = arith.constant 0 : index
      %c0_6 = arith.constant 0 : index
      %21 = vector.load %arg15[%c0_5, %c0_6] : memref<8x32xf32, #tpu.memory_space<vmem>>, vector<8x32xf32>
      %c0_7 = arith.constant 0 : index
      %c0_8 = arith.constant 0 : index
      %22 = vector.load %arg6[%c0_7, %c0_8] : memref<128x32xbf16, #tpu.memory_space<vmem>>, vector<128x32xbf16>
      %cst = arith.constant dense<0.000000e+00> : vector<8x32xf32>
      %23 = tpu.matmul %20, %22, %cst {dimension_numbers = #tpu.dot_dimension_numbers<[1], [0], [0], [1], [0, 0, 1, 1], [], []>} : vector<8x128xbf16>, vector<128x32xbf16>, vector<8x32xf32> -> vector<8x32xf32>
      %24 = arith.addf %21, %23 : vector<8x32xf32>
      %c0_9 = arith.constant 0 : index
      %c0_10 = arith.constant 0 : index
      %25 = vector.load %arg15[%c0_9, %c0_10] : memref<8x32xf32, #tpu.memory_space<vmem>>, vector<8x32xf32>
      tpu.vector_store %arg15[%c0_9, %c0_10], %24 {strides = array<i32>} : memref<8x32xf32, #tpu.memory_space<vmem>>, vector<8x32xf32>,
    } else {
    }
    %c0_i32_2 = arith.constant 0 : i32
    %8 = arith.cmpi eq, %arg1, %c0_i32_2 : i32
    %9 = arith.extui %8 : i1 to i32
    %c0_i32_3 = arith.constant 0 : i32
    %10 = arith.cmpi ne, %9, %c0_i32_3 : i32
    scf.if %10 {
      %c0 = arith.constant 0 : index
      %c0_4 = arith.constant 0 : index
      %11 = vector.load %arg4[%c0, %c0_4] : memref<8x32xf32, #tpu.memory_space<vmem>>, vector<8x32xf32>
      %12 = arith.truncf %11 : vector<8x32xf32> to vector<8x32xbf16>
      %c0_5 = arith.constant 0 : index
      %c0_6 = arith.constant 0 : index
      %13 = vector.load %arg15[%c0_5, %c0_6] : memref<8x32xf32, #tpu.memory_space<vmem>>, vector<8x32xf32>
      %14 = arith.truncf %13 : vector<8x32xf32> to vector<8x32xbf16>
      %c0_7 = arith.constant 0 : index
      %c0_8 = arith.constant 0 : index
      %15 = vector.load %arg7[%c0_7, %c0_8] : memref<32x32xbf16, #tpu.memory_space<vmem>>, vector<32x32xbf16>
      %cst = arith.constant dense<0.000000e+00> : vector<8x32xf32>
      %16 = tpu.matmul %12, %15, %cst {dimension_numbers = #tpu.dot_dimension_numbers<[1], [0], [0], [1], [0, 0, 1, 1], [], []>} : vector<8x32xbf16>, vector<32x32xbf16>, vector<8x32xf32> -> vector<8x32xf32>
      %c0_9 = arith.constant 0 : index
      %c0_10 = arith.constant 0 : index
      %17 = vector.load %arg8[%c0_9, %c0_10] : memref<32x32xbf16, #tpu.memory_space<vmem>>, vector<32x32xbf16>
      %cst_11 = arith.constant dense<0.000000e+00> : vector<8x32xf32>
      %18 = tpu.matmul %14, %17, %cst_11 {dimension_numbers = #tpu.dot_dimension_numbers<[1], [0], [0], [1], [0, 0, 1, 1], [], []>} : vector<8x32xbf16>, vector<32x32xbf16>, vector<8x32xf32> -> vector<8x32xf32>
      %19 = arith.addf %16, %18 : vector<8x32xf32>
      %c0_12 = arith.constant 0 : index
      %c0_13 = arith.constant 0 : index
      %20 = vector.load %arg9[%c0_12, %c0_13] : memref<1x32xf32, #tpu.memory_space<vmem>>, vector<1x32xf32>
      %21 = vector.broadcast %20 : vector<1x32xf32> to vector<8x32xf32>
      %22 = arith.addf %19, %21 : vector<8x32xf32>
      %c0_14 = arith.constant 0 : index
      %c0_15 = arith.constant 0 : index
      %23 = vector.load %arg10[%c0_14, %c0_15] : memref<32x32xbf16, #tpu.memory_space<vmem>>, vector<32x32xbf16>
      %c0_16 = arith.constant 0 : index
      %c0_17 = arith.constant 0 : index
      %24 = vector.load %arg11[%c0_16, %c0_17] : memref<1x32xf32, #tpu.memory_space<vmem>>, vector<1x32xf32>
      %25 = arith.negf %22 : vector<8x32xf32>
      %26 = math.exp %25 : vector<8x32xf32>
      %cst_18 = arith.constant 1.000000e+00 : f32
      %27 = vector.broadcast %cst_18 : f32 to vector<8x32xf32>
      %28 = arith.addf %27, %26 : vector<8x32xf32>
      %29 = arith.divf %27, %28 : vector<8x32xf32>
      %30 = arith.mulf %22, %29 : vector<8x32xf32>
      %31 = arith.truncf %30 : vector<8x32xf32> to vector<8x32xbf16>
      %cst_19 = arith.constant dense<0.000000e+00> : vector<8x32xf32>
      %32 = tpu.matmul %31, %23, %cst_19 {dimension_numbers = #tpu.dot_dimension_numbers<[1], [0], [0], [1], [0, 0, 1, 1], [], []>} : vector<8x32xbf16>, vector<32x32xbf16>, vector<8x32xf32> -> vector<8x32xf32>
      %33 = vector.broadcast %24 : vector<1x32xf32> to vector<8x32xf32>
      %34 = arith.addf %32, %33 : vector<8x32xf32>
      %c0_20 = arith.constant 0 : index
      %c0_21 = arith.constant 0 : index
      %35 = vector.load %arg12[%c0_20, %c0_21] : memref<32x32xbf16, #tpu.memory_space<vmem>>, vector<32x32xbf16>
      %c0_22 = arith.constant 0 : index
      %c0_23 = arith.constant 0 : index
      %36 = vector.load %arg13[%c0_22, %c0_23] : memref<1x32xf32, #tpu.memory_space<vmem>>, vector<1x32xf32>
      %37 = arith.negf %34 : vector<8x32xf32>
      %38 = math.exp %37 : vector<8x32xf32>
      %cst_24 = arith.constant 1.000000e+00 : f32
      %39 = vector.broadcast %cst_24 : f32 to vector<8x32xf32>
      %40 = arith.addf %39, %38 : vector<8x32xf32>
      %41 = arith.divf %39, %40 : vector<8x32xf32>
      %42 = arith.mulf %34, %41 : vector<8x32xf32>
      %43 = arith.truncf %42 : vector<8x32xf32> to vector<8x32xbf16>
      %cst_25 = arith.constant dense<0.000000e+00> : vector<8x32xf32>
      %44 = tpu.matmul %43, %35, %cst_25 {dimension_numbers = #tpu.dot_dimension_numbers<[1], [0], [0], [1], [0, 0, 1, 1], [], []>} : vector<8x32xbf16>, vector<32x32xbf16>, vector<8x32xf32> -> vector<8x32xf32>
      %45 = vector.broadcast %36 : vector<1x32xf32> to vector<8x32xf32>
      %46 = arith.addf %44, %45 : vector<8x32xf32>
      %c0_26 = arith.constant 0 : index
      %c0_27 = arith.constant 0 : index
      %47 = vector.load %arg14[%c0_26, %c0_27] : memref<8x32xf32, #tpu.memory_space<vmem>>, vector<8x32xf32>
      tpu.vector_store %arg14[%c0_26, %c0_27], %46 {strides = array<i32>} : memref<8x32xf32, #tpu.memory_space<vmem>>, vector<8x32xf32>,
    } else {
    }
    return
  }
  func.func @transform_0(%arg0: i32, %arg1: i32, %arg2: memref<2xi32, #tpu.memory_space<smem>>, %arg3: memref<2xi32, #tpu.memory_space<smem>>) -> (i32, i32) {
    %c0_i32 = arith.constant 0 : i32
    %c0_i32_0 = arith.constant 0 : i32
    return %arg0, %c0_i32 : i32, i32
  }
  func.func @transform_1(%arg0: i32, %arg1: i32, %arg2: memref<2xi32, #tpu.memory_space<smem>>, %arg3: memref<2xi32, #tpu.memory_space<smem>>) -> (i32, i32) {
    %0 = arith.index_cast %arg0 : i32 to index
    %1 = memref.load %arg2[%0] : memref<2xi32, #tpu.memory_space<smem>>
    %2 = arith.index_cast %arg0 : i32 to index
    %3 = memref.load %arg3[%2] : memref<2xi32, #tpu.memory_space<smem>>
    %c1_i32 = arith.constant 1 : i32
    %4 = arith.subi %3, %c1_i32 : i32
    %c0_i32 = arith.constant 0 : i32
    %5 = arith.maxsi %4, %c0_i32 : i32
    %6 = arith.minsi %arg1, %5 : i32
    %7 = arith.addi %1, %6 : i32
    %c0_i32_0 = arith.constant 0 : i32
    %c0_i32_1 = arith.constant 0 : i32
    return %c0_i32_0, %7 : i32, i32
  }
  func.func @transform_2(%arg0: i32, %arg1: i32, %arg2: memref<2xi32, #tpu.memory_space<smem>>, %arg3: memref<2xi32, #tpu.memory_space<smem>>) -> (i32, i32) {
    %0 = arith.index_cast %arg0 : i32 to index
    %1 = memref.load %arg2[%0] : memref<2xi32, #tpu.memory_space<smem>>
    %2 = arith.index_cast %arg0 : i32 to index
    %3 = memref.load %arg3[%2] : memref<2xi32, #tpu.memory_space<smem>>
    %c1_i32 = arith.constant 1 : i32
    %4 = arith.subi %3, %c1_i32 : i32
    %c0_i32 = arith.constant 0 : i32
    %5 = arith.maxsi %4, %c0_i32 : i32
    %6 = arith.minsi %arg1, %5 : i32
    %7 = arith.addi %1, %6 : i32
    %c0_i32_0 = arith.constant 0 : i32
    %c0_i32_1 = arith.constant 0 : i32
    return %7, %c0_i32_0 : i32, i32
  }
  func.func @transform_3(%arg0: i32, %arg1: i32, %arg2: memref<2xi32, #tpu.memory_space<smem>>, %arg3: memref<2xi32, #tpu.memory_space<smem>>) -> (i32, i32) {
    %c0_i32 = arith.constant 0 : i32
    %c0_i32_0 = arith.constant 0 : i32
    %c0_i32_1 = arith.constant 0 : i32
    return %c0_i32, %c0_i32_0 : i32, i32
  }
  func.func @transform_4(%arg0: i32, %arg1: i32, %arg2: memref<2xi32, #tpu.memory_space<smem>>, %arg3: memref<2xi32, #tpu.memory_space<smem>>) -> (i32, i32) {
    %c0_i32 = arith.constant 0 : i32
    %c0_i32_0 = arith.constant 0 : i32
    %c0_i32_1 = arith.constant 0 : i32
    return %c0_i32, %c0_i32_0 : i32, i32
  }
  func.func @transform_5(%arg0: i32, %arg1: i32, %arg2: memref<2xi32, #tpu.memory_space<smem>>, %arg3: memref<2xi32, #tpu.memory_space<smem>>) -> (i32, i32) {
    %c0_i32 = arith.constant 0 : i32
    %c0_i32_0 = arith.constant 0 : i32
    %c0_i32_1 = arith.constant 0 : i32
    return %c0_i32, %c0_i32_0 : i32, i32
  }
  func.func @transform_6(%arg0: i32, %arg1: i32, %arg2: memref<2xi32, #tpu.memory_space<smem>>, %arg3: memref<2xi32, #tpu.memory_space<smem>>) -> (i32, i32) {
    %c0_i32 = arith.constant 0 : i32
    %c0_i32_0 = arith.constant 0 : i32
    %c0_i32_1 = arith.constant 0 : i32
    return %c0_i32, %c0_i32_0 : i32, i32
  }
  func.func @transform_7(%arg0: i32, %arg1: i32, %arg2: memref<2xi32, #tpu.memory_space<smem>>, %arg3: memref<2xi32, #tpu.memory_space<smem>>) -> (i32, i32) {
    %c0_i32 = arith.constant 0 : i32
    %c0_i32_0 = arith.constant 0 : i32
    %c0_i32_1 = arith.constant 0 : i32
    return %c0_i32, %c0_i32_0 : i32, i32
  }
  func.func @transform_8(%arg0: i32, %arg1: i32, %arg2: memref<2xi32, #tpu.memory_space<smem>>, %arg3: memref<2xi32, #tpu.memory_space<smem>>) -> (i32, i32) {
    %c0_i32 = arith.constant 0 : i32
    %c0_i32_0 = arith.constant 0 : i32
    %c0_i32_1 = arith.constant 0 : i32
    return %c0_i32, %c0_i32_0 : i32, i32
  }
  func.func @transform_9(%arg0: i32, %arg1: i32, %arg2: memref<2xi32, #tpu.memory_space<smem>>, %arg3: memref<2xi32, #tpu.memory_space<smem>>) -> (i32, i32) {
    %c0_i32 = arith.constant 0 : i32
    %c0_i32_0 = arith.constant 0 : i32
    %c0_i32_1 = arith.constant 0 : i32
    return %c0_i32, %c0_i32_0 : i32, i32
  }
  func.func @transform_10(%arg0: i32, %arg1: i32, %arg2: memref<2xi32, #tpu.memory_space<smem>>, %arg3: memref<2xi32, #tpu.memory_space<smem>>) -> (i32, i32) {
    %c0_i32 = arith.constant 0 : i32
    %c0_i32_0 = arith.constant 0 : i32
    return %arg0, %c0_i32 : i32, i32
  }
}

</mosaic_0001>

<llo_original>
// kernel: tpu_custom_call.1
$region0: #{tpu_custom_call.1}
  #allocation0 [shape = 'u32[]', space=smem, size = 0x4, offset = 0x4, fixed_abs, tag = 'smem constant byte address 0x4 - core index']
  #allocation1 [shape = 'u32[72,128]{1,0:T(1,128)}', space=vmem, size = 0x9000, scoped, tag = 'internal scratch']
  #allocation2 [shape = 'f32[8,32]{1,0:T(8,128)}', space=vmem, size = 0x1000, scoped, tag = 'scratch operand']
  #allocation3 [shape = 's32[1]{0}', space=sflag, size = 0x4, scoped, tag = 'scoped memory for tpu_custom_call.1']
  #allocation4 [shape = 'u8[512]{0}', space=smem, size = 0x200, scoped, tag = 'prefetched SMEM operand 0']
  #allocation5 [shape = 'u8[512]{0}', space=smem, size = 0x200, scoped, tag = 'prefetched SMEM operand 1']
  %s0 = inlined_call_operand.hbm [shape: s32[2], index: 0, kind: input, shape index: {}]
  %s1 = inlined_call_operand.hbm [shape: s32[2], index: 1, kind: input, shape index: {}]
  %s2 = inlined_call_operand.vmem [shape: f32[16,32], index: 2, kind: input, shape index: {}]
  %s3 = inlined_call_operand.vmem [shape: s32[1,128], index: 3, kind: input, shape index: {}]
  %s4 = inlined_call_operand.vmem [shape: bf16[128,32], index: 4, kind: input, shape index: {}]
  %s5 = inlined_call_operand.vmem [shape: bf16[32,32], index: 5, kind: input, shape index: {}]
  %s6 = inlined_call_operand.vmem [shape: bf16[32,32], index: 6, kind: input, shape index: {}]
  %s7 = inlined_call_operand.vmem [shape: f32[1,32], index: 7, kind: input, shape index: {}]
  %s8 = inlined_call_operand.vmem [shape: bf16[32,32], index: 8, kind: input, shape index: {}]
  %s9 = inlined_call_operand.vmem [shape: f32[1,32], index: 9, kind: input, shape index: {}]
  %s10 = inlined_call_operand.vmem [shape: bf16[32,32], index: 10, kind: input, shape index: {}]
  %s11 = inlined_call_operand.vmem [shape: f32[1,32], index: 11, kind: input, shape index: {}]
  %s12 = inlined_call_operand.hbm [shape: f32[16,32], index: 12, kind: output, shape index: {}]
  %s13 = sld [smem:[#allocation0]]
  $region85: #{tpu_custom_call.1} parent=0
    _
  %s15 = ssub.s32 1, %s13
  %s16 = scalar_select 0, %s15, %s13
  %s18 = sshll.u32 %s0, 4
  %s19 = int_to_ptr.hbm [resolvable:$true] %s18
  %21 = dma.hbm_to_smem %s19, 16, [#allocation4], [#allocation3]
  %s23 = sshll.u32 %s1, 4
  %s24 = int_to_ptr.hbm [resolvable:$true] %s23
  %26 = dma.hbm_to_smem %s24, 16, [#allocation5], [#allocation3]
  %28 = dma.done [#allocation3], 32
  %29 = sfence
  $region1: #{tpu_custom_call.1} parent=0
    #allocation6 [shape = 'u8[8192]{0}', space=vmem, size = 0x2000, scoped, tag = 'output window, operand 0']
    #allocation7 [shape = 's32[2]{0}', space=sflag, size = 0x8, scoped, tag = 'scoped memory for tpu_custom_call.1']
    %30 = vsyncpa [#allocation7], 0
    %s31 = scalar_lea.sflag [#allocation7], 1
    %32 = vsyncpa %s31, 0
    loop: start=0, step=1, limit=4
    $region2: #{tpu_custom_call.1} parent=1 // loop_pre_header
      _
    $region3: #{tpu_custom_call.1} parent=1 // loop_header
      %s34 = sphi 0, %s38
      %p35 = scmp.ge.s32.totalorder %s34, 4
      %s41 = sphi 0, %s53
      %s42 = sphi 0, %s49
      %s43 = sphi 0, %s41
      %s44 = sphi 0, %s42
      %s45 = sphi 0, %s43
      %s46 = sphi 0, %s44
      %s56 = sphi 0, %s58
      %s59 = sphi 0, %s56
      %s60 = sphi 0, %s59
      %s76 = sphi 0, %s60
      %s98 = sphi 0, %s100
      %s101 = sphi 0, %s98
      %s102 = sphi 0, %s101
      %s118 = sphi 0, %s102
      %s140 = sphi 0, %s142
      %s143 = sphi 0, %s140
      %s144 = sphi 0, %s143
      %s160 = sphi 0, %s144
      %s164 = sphi 0, %s164
      %s166 = sphi 0, %s164
      %s167 = sphi 0, %s166
      %s181 = sphi 0, %s167
      %s185 = sphi 0, %s185
      %s187 = sphi 0, %s185
      %s188 = sphi 0, %s187
      %s202 = sphi 0, %s188
      %s206 = sphi 0, %s206
      %s208 = sphi 0, %s206
      %s209 = sphi 0, %s208
      %s223 = sphi 0, %s209
      %s227 = sphi 0, %s227
      %s229 = sphi 0, %s227
      %s230 = sphi 0, %s229
      %s244 = sphi 0, %s230
      %s248 = sphi 0, %s248
      %s250 = sphi 0, %s248
      %s251 = sphi 0, %s250
      %s265 = sphi 0, %s251
      %s269 = sphi 0, %s269
      %s271 = sphi 0, %s269
      %s272 = sphi 0, %s271
      %s286 = sphi 0, %s272
      %s290 = sphi 0, %s290
      %s292 = sphi 0, %s290
      %s293 = sphi 0, %s292
      %s307 = sphi 0, %s293
      %s313 = sphi 0, %s315
      %s316 = sphi 0, %s313
      %s317 = sphi 0, %s316
      %s333 = sphi 0, %s317
    $region4: #{tpu_custom_call.1} parent=1 // loop_header_branch
      %37 = sbr.rel (%p35) target = $region8
    $region5: #{tpu_custom_call.1} parent=1 // loop_body
      %s39 = ssub.s32 %s34, 1
      %s40 = ssub.s32 %s34, 2
      %s47 = sadd.s32 1, %s42
      %p48 = scmp.ge.s32.totalorder %s47, 1
      %s49 = scalar_select %p48, 0, %s47
      %s50 = sadd.s32 1, %s41
      %s51 = scalar_select %p48, %s50, %s41
      %p52 = scmp.ge.s32.totalorder %s51, 2
      %s53 = scalar_select %p52, 0, %s51
      %s54 = ssub.s32 %s41, %s53
      %p55 = scmp.eq.s32.totalorder %s54, 0
      %s57 = sadd.s32 %s56, 1
      %s58 = scalar_select %p55, %s56, %s57
      %p61 = pneg %p55
      %p62 = scmp.eq.s32.totalorder %s34, 1
      %p63 = por %p61, %p62
      %p64 = scmp.ne.s32.totalorder %s56, %s59
      %p65 = scmp.eq.s32.totalorder %s34, 0
      %p66 = por %p64, %p65
      %p67 = scmp.ne.s32.totalorder %s56, %s59
      %p68 = scmp.eq.s32.totalorder %s39, 1
      %p69 = por %p67, %p68
      %p70 = scmp.ne.s32.totalorder %s59, %s60
      %p71 = scmp.eq.s32.totalorder %s39, 0
      %p72 = por %p70, %p71
      %p73 = scmp.ne.s32.totalorder %s59, %s60
      %p74 = scmp.eq.s32.totalorder %s40, 1
      %p75 = por %p73, %p74
      %p77 = scmp.ne.s32.totalorder %s60, %s76
      %p78 = scmp.eq.s32.totalorder %s40, 0
      %p79 = por %p77, %p78
      %s80 = sld [smem:[#allocation4 + %s41]]
      %s81 = sld [smem:[#allocation5 + %s41]]
      %s82 = ssub.s32 %s81, 1
      %p83 = scmp.gt.s32.totalorder %s82, 0
      %s84 = scalar_select %p83, %s82, 0
      %p85 = scmp.lt.s32.totalorder %s42, %s84
      %s86 = scalar_select %p85, %s42, %s84
      %s87 = sadd.s32 %s80, %s86
      %s88 = sld [smem:[#allocation4 + %s53]]
      %s89 = sld [smem:[#allocation5 + %s53]]
      %s90 = ssub.s32 %s89, 1
      %p91 = scmp.gt.s32.totalorder %s90, 0
      %s92 = scalar_select %p91, %s90, 0
      %p93 = scmp.lt.s32.totalorder %s49, %s92
      %s94 = scalar_select %p93, %s49, %s92
      %s95 = sadd.s32 %s88, %s94
      %s96 = ssub.s32 %s87, %s95
      %p97 = scmp.eq.s32.totalorder %s96, 0
      %s99 = sadd.s32 %s98, 1
      %s100 = scalar_select %p97, %s98, %s99
      %p103 = pneg %p97
      %p104 = scmp.eq.s32.totalorder %s34, 1
      %p105 = por %p103, %p104
      %p106 = scmp.ne.s32.totalorder %s98, %s101
      %p107 = scmp.eq.s32.totalorder %s34, 0
      %p108 = por %p106, %p107
      %p109 = scmp.ne.s32.totalorder %s98, %s101
      %p110 = scmp.eq.s32.totalorder %s39, 1
      %p111 = por %p109, %p110
      %p112 = scmp.ne.s32.totalorder %s101, %s102
      %p113 = scmp.eq.s32.totalorder %s39, 0
      %p114 = por %p112, %p113
      %p115 = scmp.ne.s32.totalorder %s101, %s102
      %p116 = scmp.eq.s32.totalorder %s40, 1
      %p117 = por %p115, %p116
      %p119 = scmp.ne.s32.totalorder %s102, %s118
      %p120 = scmp.eq.s32.totalorder %s40, 0
      %p121 = por %p119, %p120
      %s122 = sld [smem:[#allocation4 + %s41]]
      %s123 = sld [smem:[#allocation5 + %s41]]
      %s124 = ssub.s32 %s123, 1
      %p125 = scmp.gt.s32.totalorder %s124, 0
      %s126 = scalar_select %p125, %s124, 0
      %p127 = scmp.lt.s32.totalorder %s42, %s126
      %s128 = scalar_select %p127, %s42, %s126
      %s129 = sadd.s32 %s122, %s128
      %s130 = sld [smem:[#allocation4 + %s53]]
      %s131 = sld [smem:[#allocation5 + %s53]]
      %s132 = ssub.s32 %s131, 1
      %p133 = scmp.gt.s32.totalorder %s132, 0
      %s134 = scalar_select %p133, %s132, 0
      %p135 = scmp.lt.s32.totalorder %s49, %s134
      %s136 = scalar_select %p135, %s49, %s134
      %s137 = sadd.s32 %s130, %s136
      %s138 = ssub.s32 %s129, %s137
      %p139 = scmp.eq.s32.totalorder %s138, 0
      %s141 = sadd.s32 %s140, 1
      %s142 = scalar_select %p139, %s140, %s141
      %p145 = pneg %p139
      %p146 = scmp.eq.s32.totalorder %s34, 1
      %p147 = por %p145, %p146
      %p148 = scmp.ne.s32.totalorder %s140, %s143
      %p149 = scmp.eq.s32.totalorder %s34, 0
      %p150 = por %p148, %p149
      %p151 = scmp.ne.s32.totalorder %s140, %s143
      %p152 = scmp.eq.s32.totalorder %s39, 1
      %p153 = por %p151, %p152
      %p154 = scmp.ne.s32.totalorder %s143, %s144
      %p155 = scmp.eq.s32.totalorder %s39, 0
      %p156 = por %p154, %p155
      %p157 = scmp.ne.s32.totalorder %s143, %s144
      %p158 = scmp.eq.s32.totalorder %s40, 1
      %p159 = por %p157, %p158
      %p161 = scmp.ne.s32.totalorder %s144, %s160
      %p162 = scmp.eq.s32.totalorder %s40, 0
      %p163 = por %p161, %p162
      %s165 = sadd.s32 %s164, 1
      %p168 = scmp.eq.s32.totalorder %s34, 1
      %p169 = scmp.ne.s32.totalorder %s164, %s166
      %p170 = scmp.eq.s32.totalorder %s34, 0
      %p171 = por %p169, %p170
      %p172 = scmp.ne.s32.totalorder %s164, %s166
      %p173 = scmp.eq.s32.totalorder %s39, 1
      %p174 = por %p172, %p173
      %p175 = scmp.ne.s32.totalorder %s166, %s167
      %p176 = scmp.eq.s32.totalorder %s39, 0
      %p177 = por %p175, %p176
      %p178 = scmp.ne.s32.totalorder %s166, %s167
      %p179 = scmp.eq.s32.totalorder %s40, 1
      %p180 = por %p178, %p179
      %p182 = scmp.ne.s32.totalorder %s167, %s181
      %p183 = scmp.eq.s32.totalorder %s40, 0
      %p184 = por %p182, %p183
      %s186 = sadd.s32 %s185, 1
      %p189 = scmp.eq.s32.totalorder %s34, 1
      %p190 = scmp.ne.s32.totalorder %s185, %s187
      %p191 = scmp.eq.s32.totalorder %s34, 0
      %p192 = por %p190, %p191
      %p193 = scmp.ne.s32.totalorder %s185, %s187
      %p194 = scmp.eq.s32.totalorder %s39, 1
      %p195 = por %p193, %p194
      %p196 = scmp.ne.s32.totalorder %s187, %s188
      %p197 = scmp.eq.s32.totalorder %s39, 0
      %p198 = por %p196, %p197
      %p199 = scmp.ne.s32.totalorder %s187, %s188
      %p200 = scmp.eq.s32.totalorder %s40, 1
      %p201 = por %p199, %p200
      %p203 = scmp.ne.s32.totalorder %s188, %s202
      %p204 = scmp.eq.s32.totalorder %s40, 0
      %p205 = por %p203, %p204
      %s207 = sadd.s32 %s206, 1
      %p210 = scmp.eq.s32.totalorder %s34, 1
      %p211 = scmp.ne.s32.totalorder %s206, %s208
      %p212 = scmp.eq.s32.totalorder %s34, 0
      %p213 = por %p211, %p212
      %p214 = scmp.ne.s32.totalorder %s206, %s208
      %p215 = scmp.eq.s32.totalorder %s39, 1
      %p216 = por %p214, %p215
      %p217 = scmp.ne.s32.totalorder %s208, %s209
      %p218 = scmp.eq.s32.totalorder %s39, 0
      %p219 = por %p217, %p218
      %p220 = scmp.ne.s32.totalorder %s208, %s209
      %p221 = scmp.eq.s32.totalorder %s40, 1
      %p222 = por %p220, %p221
      %p224 = scmp.ne.s32.totalorder %s209, %s223
      %p225 = scmp.eq.s32.totalorder %s40, 0
      %p226 = por %p224, %p225
      %s228 = sadd.s32 %s227, 1
      %p231 = scmp.eq.s32.totalorder %s34, 1
      %p232 = scmp.ne.s32.totalorder %s227, %s229
      %p233 = scmp.eq.s32.totalorder %s34, 0
      %p234 = por %p232, %p233
      %p235 = scmp.ne.s32.totalorder %s227, %s229
      %p236 = scmp.eq.s32.totalorder %s39, 1
      %p237 = por %p235, %p236
      %p238 = scmp.ne.s32.totalorder %s229, %s230
      %p239 = scmp.eq.s32.totalorder %s39, 0
      %p240 = por %p238, %p239
      %p241 = scmp.ne.s32.totalorder %s229, %s230
      %p242 = scmp.eq.s32.totalorder %s40, 1
      %p243 = por %p241, %p242
      %p245 = scmp.ne.s32.totalorder %s230, %s244
      %p246 = scmp.eq.s32.totalorder %s40, 0
      %p247 = por %p245, %p246
      %s249 = sadd.s32 %s248, 1
      %p252 = scmp.eq.s32.totalorder %s34, 1
      %p253 = scmp.ne.s32.totalorder %s248, %s250
      %p254 = scmp.eq.s32.totalorder %s34, 0
      %p255 = por %p253, %p254
      %p256 = scmp.ne.s32.totalorder %s248, %s250
      %p257 = scmp.eq.s32.totalorder %s39, 1
      %p258 = por %p256, %p257
      %p259 = scmp.ne.s32.totalorder %s250, %s251
      %p260 = scmp.eq.s32.totalorder %s39, 0
      %p261 = por %p259, %p260
      %p262 = scmp.ne.s32.totalorder %s250, %s251
      %p263 = scmp.eq.s32.totalorder %s40, 1
      %p264 = por %p262, %p263
      %p266 = scmp.ne.s32.totalorder %s251, %s265
      %p267 = scmp.eq.s32.totalorder %s40, 0
      %p268 = por %p266, %p267
      %s270 = sadd.s32 %s269, 1
      %p273 = scmp.eq.s32.totalorder %s34, 1
      %p274 = scmp.ne.s32.totalorder %s269, %s271
      %p275 = scmp.eq.s32.totalorder %s34, 0
      %p276 = por %p274, %p275
      %p277 = scmp.ne.s32.totalorder %s269, %s271
      %p278 = scmp.eq.s32.totalorder %s39, 1
      %p279 = por %p277, %p278
      %p280 = scmp.ne.s32.totalorder %s271, %s272
      %p281 = scmp.eq.s32.totalorder %s39, 0
      %p282 = por %p280, %p281
      %p283 = scmp.ne.s32.totalorder %s271, %s272
      %p284 = scmp.eq.s32.totalorder %s40, 1
      %p285 = por %p283, %p284
      %p287 = scmp.ne.s32.totalorder %s272, %s286
      %p288 = scmp.eq.s32.totalorder %s40, 0
      %p289 = por %p287, %p288
      %s291 = sadd.s32 %s290, 1
      %p294 = scmp.eq.s32.totalorder %s34, 1
      %p295 = scmp.ne.s32.totalorder %s290, %s292
      %p296 = scmp.eq.s32.totalorder %s34, 0
      %p297 = por %p295, %p296
      %p298 = scmp.ne.s32.totalorder %s290, %s292
      %p299 = scmp.eq.s32.totalorder %s39, 1
      %p300 = por %p298, %p299
      %p301 = scmp.ne.s32.totalorder %s292, %s293
      %p302 = scmp.eq.s32.totalorder %s39, 0
      %p303 = por %p301, %p302
      %p304 = scmp.ne.s32.totalorder %s292, %s293
      %p305 = scmp.eq.s32.totalorder %s40, 1
      %p306 = por %p304, %p305
      %p308 = scmp.ne.s32.totalorder %s293, %s307
      %p309 = scmp.eq.s32.totalorder %s40, 0
      %p310 = por %p308, %p309
      %s311 = ssub.s32 %s41, %s53
      %p312 = scmp.eq.s32.totalorder %s311, 0
      %s314 = sadd.s32 %s313, 1
      %s315 = scalar_select %p312, %s313, %s314
      %p318 = pneg %p312
      %p319 = scmp.eq.s32.totalorder %s34, 1
      %p320 = por %p318, %p319
      %p321 = scmp.ne.s32.totalorder %s313, %s316
      %p322 = scmp.eq.s32.totalorder %s34, 0
      %p323 = por %p321, %p322
      %p324 = scmp.ne.s32.totalorder %s313, %s316
      %p325 = scmp.eq.s32.totalorder %s39, 1
      %p326 = por %p324, %p325
      %p327 = scmp.ne.s32.totalorder %s316, %s317
      %p328 = scmp.eq.s32.totalorder %s39, 0
      %p329 = por %p327, %p328
      %p330 = scmp.ne.s32.totalorder %s316, %s317
      %p331 = scmp.eq.s32.totalorder %s40, 1
      %p332 = por %p330, %p331
      %p334 = scmp.ne.s32.totalorder %s317, %s333
      %p335 = scmp.eq.s32.totalorder %s40, 0
      %p336 = por %p334, %p335
      %p337 = scmp.le.s32.totalorder 1, %s34
      %p338 = scmp.lt.s32.totalorder %s34, 3
      %p339 = pnand %p337, %p338
      %p340 = pneg %p339
      // Predicated region
      $region9: #{tpu_custom_call.1} parent=5 // pred_check
        _
      $region10: #{tpu_custom_call.1} parent=5 // pred_check_branch
        %342 = sbr.rel (%p339) target = $region12
      $region11: #{tpu_custom_call.1} parent=5 // pred_region
        %s343 = ssub.s32 %s34, 1
        // Predicated region
        $region13: #{tpu_custom_call.1} parent=11 // pred_check
          %p344 = pneg %p177
        $region14: #{tpu_custom_call.1} parent=11 // pred_check_branch
          %346 = sbr.rel (%p344) target = $region16
        $region15: #{tpu_custom_call.1} parent=11 // pred_region
          _
        $region16: #{tpu_custom_call.1} parent=11 // pred_fallthru
          _
        // Predicated region
        $region17: #{tpu_custom_call.1} parent=11 // pred_check
          %p347 = pneg %p198
        $region18: #{tpu_custom_call.1} parent=11 // pred_check_branch
          %349 = sbr.rel (%p347) target = $region20
        $region19: #{tpu_custom_call.1} parent=11 // pred_region
          _
        $region20: #{tpu_custom_call.1} parent=11 // pred_fallthru
          _
        // Predicated region
        $region21: #{tpu_custom_call.1} parent=11 // pred_check
          %p350 = pneg %p219
        $region22: #{tpu_custom_call.1} parent=11 // pred_check_branch
          %352 = sbr.rel (%p350) target = $region24
        $region23: #{tpu_custom_call.1} parent=11 // pred_region
          _
        $region24: #{tpu_custom_call.1} parent=11 // pred_fallthru
          _
        // Predicated region
        $region25: #{tpu_custom_call.1} parent=11 // pred_check
          %p353 = pneg %p240
        $region26: #{tpu_custom_call.1} parent=11 // pred_check_branch
          %355 = sbr.rel (%p353) target = $region28
        $region27: #{tpu_custom_call.1} parent=11 // pred_region
          _
        $region28: #{tpu_custom_call.1} parent=11 // pred_fallthru
          _
        // Predicated region
        $region29: #{tpu_custom_call.1} parent=11 // pred_check
          %p356 = pneg %p261
        $region30: #{tpu_custom_call.1} parent=11 // pred_check_branch
          %358 = sbr.rel (%p356) target = $region32
        $region31: #{tpu_custom_call.1} parent=11 // pred_region
          _
        $region32: #{tpu_custom_call.1} parent=11 // pred_fallthru
          _
        // Predicated region
        $region33: #{tpu_custom_call.1} parent=11 // pred_check
          %p359 = pneg %p282
        $region34: #{tpu_custom_call.1} parent=11 // pred_check_branch
          %361 = sbr.rel (%p359) target = $region36
        $region35: #{tpu_custom_call.1} parent=11 // pred_region
          _
        $region36: #{tpu_custom_call.1} parent=11 // pred_fallthru
          _
        // Predicated region
        $region37: #{tpu_custom_call.1} parent=11 // pred_check
          %p362 = pneg %p303
        $region38: #{tpu_custom_call.1} parent=11 // pred_check_branch
          %364 = sbr.rel (%p362) target = $region40
        $region39: #{tpu_custom_call.1} parent=11 // pred_region
          _
        $region40: #{tpu_custom_call.1} parent=11 // pred_fallthru
          _
      $region12: #{tpu_custom_call.1} parent=5 // pred_fallthru
        _
      %p365 = scmp.lt.s32.totalorder %s34, 2
      // Predicated region
      $region41: #{tpu_custom_call.1} parent=5 // pred_check
        %p366 = pneg %p365
      $region42: #{tpu_custom_call.1} parent=5 // pred_check_branch
        %368 = sbr.rel (%p366) target = $region44
      $region43: #{tpu_custom_call.1} parent=5 // pred_region
        // Predicated region
        $region45: #{tpu_custom_call.1} parent=43 // pred_check
          %p369 = pneg %p66
        $region46: #{tpu_custom_call.1} parent=43 // pred_check_branch
          %371 = sbr.rel (%p369) target = $region48
        $region47: #{tpu_custom_call.1} parent=43 // pred_region
          %p372 = scmp.lt.s32.totalorder %s41, 1
          %s373 = scalar_select %p372, %s41, 1
          %s374 = smul.addr %s373, 8
          %s375 = scalar_lea.vmem %s2, %s374
        $region48: #{tpu_custom_call.1} parent=43 // pred_fallthru
          _
        // Predicated region
        $region49: #{tpu_custom_call.1} parent=43 // pred_check
          %p376 = pneg %p108
        $region50: #{tpu_custom_call.1} parent=43 // pred_check_branch
          %378 = sbr.rel (%p376) target = $region52
        $region51: #{tpu_custom_call.1} parent=43 // pred_region
          %s379 = sld [smem:[#allocation4 + %s41]]
          %s380 = sld [smem:[#allocation5 + %s41]]
          %s381 = ssub.s32 %s380, 1
          %p382 = scmp.gt.s32.totalorder %s381, 0
          %s383 = scalar_select %p382, %s381, 0
          %p384 = scmp.lt.s32.totalorder %s42, %s383
          %s385 = scalar_select %p384, %s42, %s383
          %s386 = sadd.s32 %s379, %s385
          %p387 = scmp.lt.s32.totalorder %s386, 0
          %s388 = scalar_select %p387, %s386, 0
          %s389 = scalar_lea.vmem %s3, %s388
          %s390 = sld [smem:[#allocation4 + %s41]]
          %s391 = sld [smem:[#allocation5 + %s41]]
          %s392 = ssub.s32 %s391, 1
          %p393 = scmp.gt.s32.totalorder %s392, 0
          %s394 = scalar_select %p393, %s392, 0
          %p395 = scmp.lt.s32.totalorder %s42, %s394
          %s396 = scalar_select %p395, %s42, %s394
          %s397 = sadd.s32 %s390, %s396
        $region52: #{tpu_custom_call.1} parent=43 // pred_fallthru
          _
        // Predicated region
        $region53: #{tpu_custom_call.1} parent=43 // pred_check
          %p398 = pneg %p150
        $region54: #{tpu_custom_call.1} parent=43 // pred_check_branch
          %400 = sbr.rel (%p398) target = $region56
        $region55: #{tpu_custom_call.1} parent=43 // pred_region
          %s401 = sld [smem:[#allocation4 + %s41]]
          %s402 = sld [smem:[#allocation5 + %s41]]
          %s403 = ssub.s32 %s402, 1
          %p404 = scmp.gt.s32.totalorder %s403, 0
          %s405 = scalar_select %p404, %s403, 0
          %p406 = scmp.lt.s32.totalorder %s42, %s405
          %s407 = scalar_select %p406, %s42, %s405
          %s408 = sadd.s32 %s401, %s407
          %s409 = smul.u32 16, %s408
          %p410 = scmp.lt.s32.totalorder %s409, 15
          %s411 = scalar_select %p410, %s409, 15
          %s412 = smul.addr %s411, 4
          %s413 = scalar_lea.vmem %s4, %s412
          %s414 = sld [smem:[#allocation4 + %s41]]
          %s415 = sld [smem:[#allocation5 + %s41]]
          %s416 = ssub.s32 %s415, 1
          %p417 = scmp.gt.s32.totalorder %s416, 0
          %s418 = scalar_select %p417, %s416, 0
          %p419 = scmp.lt.s32.totalorder %s42, %s418
          %s420 = scalar_select %p419, %s42, %s418
          %s421 = sadd.s32 %s414, %s420
          %s422 = smul.u32 16, %s421
        $region56: #{tpu_custom_call.1} parent=43 // pred_fallthru
          _
      $region44: #{tpu_custom_call.1} parent=5 // pred_fallthru
        _
      %p423 = scmp.le.s32.totalorder 1, %s34
      %p424 = scmp.lt.s32.totalorder %s34, 3
      %p425 = pnand %p423, %p424
      %p426 = pneg %p425
      // Predicated region
      $region57: #{tpu_custom_call.1} parent=5 // pred_check
        _
      $region58: #{tpu_custom_call.1} parent=5 // pred_check_branch
        %428 = sbr.rel (%p425) target = $region60
      $region59: #{tpu_custom_call.1} parent=5 // pred_region
        %s429 = ssub.s32 %s34, 1
        %p430 = scmp.lt.s32.totalorder %s43, 1
        %s431 = scalar_select %p430, %s43, 1
        %s432 = smul.addr %s431, 8
        %s433 = scalar_lea.vmem %s2, %s432
        %p434 = pneg %p72
        %p435 = pneg %p69
        %s436 = sld [smem:[#allocation4 + %s43]]
        %s437 = sld [smem:[#allocation5 + %s43]]
        %s438 = ssub.s32 %s437, 1
        %p439 = scmp.gt.s32.totalorder %s438, 0
        %s440 = scalar_select %p439, %s438, 0
        %p441 = scmp.lt.s32.totalorder %s44, %s440
        %s442 = scalar_select %p441, %s44, %s440
        %s443 = sadd.s32 %s436, %s442
        %p444 = scmp.lt.s32.totalorder %s443, 0
        %s445 = scalar_select %p444, %s443, 0
        %s446 = scalar_lea.vmem %s3, %s445
        %p447 = pneg %p114
        %p448 = pneg %p111
        %s449 = sld [smem:[#allocation4 + %s43]]
        %s450 = sld [smem:[#allocation5 + %s43]]
        %s451 = ssub.s32 %s450, 1
        %p452 = scmp.gt.s32.totalorder %s451, 0
        %s453 = scalar_select %p452, %s451, 0
        %p454 = scmp.lt.s32.totalorder %s44, %s453
        %s455 = scalar_select %p454, %s44, %s453
        %s456 = sadd.s32 %s449, %s455
        %s457 = smul.u32 16, %s456
        %p458 = scmp.lt.s32.totalorder %s457, 15
        %s459 = scalar_select %p458, %s457, 15
        %s460 = smul.addr %s459, 4
        %s461 = scalar_lea.vmem %s4, %s460
        %p462 = pneg %p156
        %p463 = pneg %p153
        %p464 = pneg %p177
        %p465 = pneg %p174
        %p466 = pneg %p198
        %p467 = pneg %p195
        %p468 = pneg %p219
        %p469 = pneg %p216
        %p470 = pneg %p240
        %p471 = pneg %p237
        %p472 = pneg %p261
        %p473 = pneg %p258
        %p474 = pneg %p282
        %p475 = pneg %p279
        %p476 = pneg %p303
        %p477 = pneg %p300
        %p478 = pneg %p329
        %p479 = pneg %p326
        %s480 = sand.u32 %s316, 1
        %s481 = scalar_lea.sflag [#allocation7], %s480
        %s482 = sand.u32 %s316, 1
        %s483 = smul.addr %s482, 8
        %s484 = scalar_lea.vmem [#allocation6], %s483
        %p485 = scmp.lt.s32.totalorder %s43, 1
        %s486 = scalar_select %p485, %s43, 1
        %s487 = smul.addr %s486, 8
        %s488 = scalar_lea.vmem %s2, %s487
        %s489 = sld [smem:[#allocation4 + %s43]]
        %s490 = sld [smem:[#allocation5 + %s43]]
        %s491 = ssub.s32 %s490, 1
        %p492 = scmp.gt.s32.totalorder %s491, 0
        %s493 = scalar_select %p492, %s491, 0
        %p494 = scmp.lt.s32.totalorder %s44, %s493
        %s495 = scalar_select %p494, %s44, %s493
        %s496 = sadd.s32 %s489, %s495
        %p497 = scmp.lt.s32.totalorder %s496, 0
        %s498 = scalar_select %p497, %s496, 0
        %s499 = scalar_lea.vmem %s3, %s498
        %s500 = sld [smem:[#allocation4 + %s43]]
        %s501 = sld [smem:[#allocation5 + %s43]]
        %s502 = ssub.s32 %s501, 1
        %p503 = scmp.gt.s32.totalorder %s502, 0
        %s504 = scalar_select %p503, %s502, 0
        %p505 = scmp.lt.s32.totalorder %s44, %s504
        %s506 = scalar_select %p505, %s44, %s504
        %s507 = sadd.s32 %s500, %s506
        %s508 = sld [smem:[#allocation4 + %s43]]
        %s509 = sld [smem:[#allocation5 + %s43]]
        %s510 = ssub.s32 %s509, 1
        %p511 = scmp.gt.s32.totalorder %s510, 0
        %s512 = scalar_select %p511, %s510, 0
        %p513 = scmp.lt.s32.totalorder %s44, %s512
        %s514 = scalar_select %p513, %s44, %s512
        %s515 = sadd.s32 %s508, %s514
        %s516 = smul.u32 16, %s515
        %p517 = scmp.lt.s32.totalorder %s516, 15
        %s518 = scalar_select %p517, %s516, 15
        %s519 = smul.addr %s518, 4
        %s520 = scalar_lea.vmem %s4, %s519
        %s521 = sld [smem:[#allocation4 + %s43]]
        %s522 = sld [smem:[#allocation5 + %s43]]
        %s523 = ssub.s32 %s522, 1
        %p524 = scmp.gt.s32.totalorder %s523, 0
        %s525 = scalar_select %p524, %s523, 0
        %p526 = scmp.lt.s32.totalorder %s44, %s525
        %s527 = scalar_select %p526, %s44, %s525
        %s528 = sadd.s32 %s521, %s527
        %s529 = smul.u32 16, %s528
        %p531 = scmp.eq.s32.totalorder %s44, 0
        // Predicated region
        $region61: #{tpu_custom_call.1} parent=59 // pred_check
          %p532 = pneg %p531
        $region62: #{tpu_custom_call.1} parent=59 // pred_check_branch
          %534 = sbr.rel (%p532) target = $region64
        $region63: #{tpu_custom_call.1} parent=59 // pred_region
          %vm535 = vcmask 261120
          %536 = vst.msk [vmem:[#allocation2] sm:$0xff] %vm535, 0.0
        $region64: #{tpu_custom_call.1} parent=59 // pred_fallthru
          _
        %s537 = sld [smem:[#allocation5 + %s43]]
        %p538 = scmp.lt.s32.totalorder %s44, %s537
        // Predicated region
        $region65: #{tpu_custom_call.1} parent=59 // pred_check
          %p539 = pneg %p538
        $region66: #{tpu_custom_call.1} parent=59 // pred_check_branch
          %541 = sbr.rel (%p539) target = $region68
        $region67: #{tpu_custom_call.1} parent=59 // pred_region
          %v542 = vld [vmem:[%s499] sm:$0x1]
          %s543 = smul.u32 %s43, 8
          %v544 = vstv %s543
          %v545 = vsub.s32 %v542, %v544
          %v546 = vlaneseq
          %v547 = vshrl.u32 %v546, 7
          %v548 = vperm.slane %v545, 0
          %vm549 = vcmp.eq.s32.totalorder %v547, %v548
          %v550 = vsel %vm549, 1, 0
          %v551 = vcvt.s32.f32 %v550
          %v552 = vpack.c.bf16 %v551, %v551
          %v553 = vld [vmem:[#allocation2] sm:$0xff]
          %v554 = vld [vmem:[%s520] sm:$0xf]
          %v555 = vld [vmem:[%s520 + $0x4] sm:$0xf]
          %v556 = vld [vmem:[%s520 + $0x8] sm:$0xf]
          %v557 = vld [vmem:[%s520 + $0xc] sm:$0xf]
          %v558 = vld [vmem:[%s520 + $0x10] sm:$0xf]
          %v559 = vld [vmem:[%s520 + $0x14] sm:$0xf]
          %v560 = vld [vmem:[%s520 + $0x18] sm:$0xf]
          %v561 = vld [vmem:[%s520 + $0x1c] sm:$0xf]
          %v562 = vld [vmem:[%s520 + $0x20] sm:$0xf]
          %v563 = vld [vmem:[%s520 + $0x24] sm:$0xf]
          %v564 = vld [vmem:[%s520 + $0x28] sm:$0xf]
          %v565 = vld [vmem:[%s520 + $0x2c] sm:$0xf]
          %v566 = vld [vmem:[%s520 + $0x30] sm:$0xf]
          %v567 = vld [vmem:[%s520 + $0x34] sm:$0xf]
          %v568 = vld [vmem:[%s520 + $0x38] sm:$0xf]
          %v569 = vld [vmem:[%s520 + $0x3c] sm:$0xf]
          %v586 = vunpack.c.l.b16 %v554
          %v587 = vunpack.c.l.b16 %v555
          %v588 = vunpack.c.l.b16 %v556
          %v589 = vunpack.c.l.b16 %v557
          %v590 = vunpack.c.l.b16 %v558
          %v591 = vunpack.c.l.b16 %v559
          %v592 = vunpack.c.l.b16 %v560
          %v593 = vunpack.c.l.b16 %v561
          %v594 = vunpack.c.l.b16 %v562
          %v595 = vunpack.c.l.b16 %v563
          %v596 = vunpack.c.l.b16 %v564
          %v597 = vunpack.c.l.b16 %v565
          %v598 = vunpack.c.l.b16 %v566
          %v599 = vunpack.c.l.b16 %v567
          %v600 = vunpack.c.l.b16 %v568
          %v601 = vunpack.c.l.b16 %v569
          %v602 = vpack.c.b16 %v587, %v586
          %v603 = vpack.c.b16 %v589, %v588
          %v604 = vpack.c.b16 %v591, %v590
          %v605 = vpack.c.b16 %v593, %v592
          %v606 = vpack.c.b16 %v595, %v594
          %v607 = vpack.c.b16 %v597, %v596
          %v608 = vpack.c.b16 %v599, %v598
          %v609 = vpack.c.b16 %v601, %v600
          %618 = vmatpush.bf16.msra.mxu0 %v609
          %619 = vmatpush.bf16.msra.mxu0 %v608
          %620 = vmatpush.bf16.msra.mxu0 %v607
          %621 = vmatpush.bf16.msra.mxu0 %v606
          %622 = vmatpush.bf16.msra.mxu0 %v605
          %623 = vmatpush.bf16.msra.mxu0 %v604
          %624 = vmatpush.bf16.msra.mxu0 %v603
          %625 = vmatpush.bf16.msra.mxu0 %v602
          %626 = vmatmul.bf16.gmra.mxu0 %v552
          %v627 = vpop.f32.mrf.mxu0
          %v628 = vadd.f32 0.0, %v627
          %v629 = vpop.f32.mrf.mxu0
          %630 = vdwg.mxu0
          %v631 = vadd.f32 %v553, %v628
          %vm632 = vcmask 261120
          %633 = vst.msk [vmem:[#allocation2] sm:$0xff] %vm632, %v631
        $region68: #{tpu_custom_call.1} parent=59 // pred_fallthru
          _
        // Predicated region
        $region69: #{tpu_custom_call.1} parent=59 // pred_check
          %p634 = pneg %p531
        $region70: #{tpu_custom_call.1} parent=59 // pred_check_branch
          %636 = sbr.rel (%p634) target = $region72
        $region71: #{tpu_custom_call.1} parent=59 // pred_region
          %v637 = vld [vmem:[%s488] sm:$0xff]
          %v638 = vpack.c.bf16 %v637, %v637
          %v639 = vld [vmem:[#allocation2] sm:$0xff]
          %v640 = vpack.c.bf16 %v639, %v639
          %v641 = vld [vmem:[%s5] sm:$0xf]
          %v642 = vld [vmem:[%s5 + $0x4] sm:$0xf]
          %v643 = vld [vmem:[%s5 + $0x8] sm:$0xf]
          %v644 = vld [vmem:[%s5 + $0xc] sm:$0xf]
          %v645 = vld [vmem:[%s6] sm:$0xf]
          %v646 = vld [vmem:[%s6 + $0x4] sm:$0xf]
          %v647 = vld [vmem:[%s6 + $0x8] sm:$0xf]
          %v648 = vld [vmem:[%s6 + $0xc] sm:$0xf]
          %v653 = vunpack.c.l.b16 %v645
          %v654 = vunpack.c.l.b16 %v646
          %v655 = vunpack.c.l.b16 %v647
          %v656 = vunpack.c.l.b16 %v648
          %v657 = vpack.c.b16 %v654, %v653
          %v658 = vpack.c.b16 %v656, %v655
          %vm661 = vcmask 261120
          %v663 = vsel %vm661, %v640, 0
          %665 = vmatpush.bf16.msra.mxu0 0
          %666 = vmatpush.bf16.msra.mxu0 0
          %667 = vmatpush.bf16.msra.mxu0 0
          %668 = vmatpush.bf16.msra.mxu0 0
          %669 = vmatpush.bf16.msra.mxu0 0
          %670 = vmatpush.bf16.msra.mxu0 0
          %671 = vmatpush.bf16.msra.mxu0 %v658
          %672 = vmatpush.bf16.msra.mxu0 %v657
          %673 = vmatmul.bf16.gmra.mxu0 %v663
          %v674 = vpop.f32.mrf.mxu0
          %v675 = vadd.f32 0.0, %v674
          %v676 = vpop.f32.mrf.mxu0
          %677 = vdwg.mxu0
          %v682 = vunpack.c.l.b16 %v641
          %v683 = vunpack.c.l.b16 %v642
          %v684 = vunpack.c.l.b16 %v643
          %v685 = vunpack.c.l.b16 %v644
          %v686 = vpack.c.b16 %v683, %v682
          %v687 = vpack.c.b16 %v685, %v684
          %v691 = vsel %vm661, %v638, 0
          %693 = vmatpush.bf16.msra.mxu0 0
          %694 = vmatpush.bf16.msra.mxu0 0
          %695 = vmatpush.bf16.msra.mxu0 0
          %696 = vmatpush.bf16.msra.mxu0 0
          %697 = vmatpush.bf16.msra.mxu0 0
          %698 = vmatpush.bf16.msra.mxu0 0
          %699 = vmatpush.bf16.msra.mxu0 %v687
          %700 = vmatpush.bf16.msra.mxu0 %v686
          %701 = vmatmul.bf16.gmra.mxu0 %v691
          %v702 = vpop.f32.mrf.mxu0
          %v703 = vadd.f32 %v675, %v702
          %v704 = vpop.f32.mrf.mxu0
          %705 = vdwg.mxu0
          %v706 = vld [vmem:[%s7] sm:$0x1]
          %v708 = vperm.slane %v706, 0
          %v710 = vadd.f32 %v703, %v708
          %v711 = vld [vmem:[%s8] sm:$0xf]
          %v712 = vld [vmem:[%s8 + $0x4] sm:$0xf]
          %v713 = vld [vmem:[%s8 + $0x8] sm:$0xf]
          %v714 = vld [vmem:[%s8 + $0xc] sm:$0xf]
          %v715 = vld [vmem:[%s9] sm:$0x1]
          %v716 = vxor.u32 %v710, 2147483648
          %v717 = vmul.f32 %v716, 1.442695
          %v718 = vpow.pop %v717
          %v719 = vadd.f32 %v718, 1.0
          %v720 = vrcp.pop %v719
          %v721 = vmul.f32 %v719, %v720
          %v722 = vsub.f32 1.0, %v721
          %v723 = vmul.f32 %v720, %v722
          %v724 = vadd.f32 %v720, %v723
          %vm725 = vweird.f32 %v719
          %vm726 = vweird.f32 %v720
          %vm727 = vmor %vm725, %vm726
          %v728 = vsel %vm727, %v720, %v724
          %v729 = vand.u32 2147483647, %v719
          %vm730 = vcmp.eq.f32.partialorder %v729, 8.507059e+37
          %v731 = vand.u32 %v719, 2147483648
          %v732 = vor.u32 1.1754944e-38, %v731
          %v733 = vsel %vm730, %v732, %v728
          %v734 = vmul.f32 1.0, %v733
          %v735 = vmul.f32 %v710, %v734
          %v736 = vpack.c.bf16 %v735, %v735
          %v738 = vperm.slane %v715, 0
          %v744 = vunpack.c.l.b16 %v711
          %v745 = vunpack.c.l.b16 %v712
          %v746 = vunpack.c.l.b16 %v713
          %v747 = vunpack.c.l.b16 %v714
          %v748 = vpack.c.b16 %v745, %v744
          %v749 = vpack.c.b16 %v747, %v746
          %v753 = vsel %vm661, %v736, 0
          %755 = vmatpush.bf16.msra.mxu0 0
          %756 = vmatpush.bf16.msra.mxu0 0
          %757 = vmatpush.bf16.msra.mxu0 0
          %758 = vmatpush.bf16.msra.mxu0 0
          %759 = vmatpush.bf16.msra.mxu0 0
          %760 = vmatpush.bf16.msra.mxu0 0
          %761 = vmatpush.bf16.msra.mxu0 %v749
          %762 = vmatpush.bf16.msra.mxu0 %v748
          %763 = vmatmul.bf16.gmra.mxu0 %v753
          %v764 = vpop.f32.mrf.mxu0
          %v765 = vadd.f32 %v738, %v764
          %v766 = vpop.f32.mrf.mxu0
          %767 = vdwg.mxu0
          %v768 = vld [vmem:[%s10] sm:$0xf]
          %v769 = vld [vmem:[%s10 + $0x4] sm:$0xf]
          %v770 = vld [vmem:[%s10 + $0x8] sm:$0xf]
          %v771 = vld [vmem:[%s10 + $0xc] sm:$0xf]
          %v772 = vld [vmem:[%s11] sm:$0x1]
          %v773 = vxor.u32 %v765, 2147483648
          %v774 = vmul.f32 %v773, 1.442695
          %v775 = vpow.pop %v774
          %v776 = vadd.f32 %v775, 1.0
          %v777 = vrcp.pop %v776
          %v778 = vmul.f32 %v776, %v777
          %v779 = vsub.f32 1.0, %v778
          %v780 = vmul.f32 %v777, %v779
          %v781 = vadd.f32 %v777, %v780
          %vm782 = vweird.f32 %v776
          %vm783 = vweird.f32 %v777
          %vm784 = vmor %vm782, %vm783
          %v785 = vsel %vm784, %v777, %v781
          %v786 = vand.u32 2147483647, %v776
          %vm787 = vcmp.eq.f32.partialorder %v786, 8.507059e+37
          %v788 = vand.u32 %v776, 2147483648
          %v789 = vor.u32 1.1754944e-38, %v788
          %v790 = vsel %vm787, %v789, %v785
          %v791 = vmul.f32 1.0, %v790
          %v792 = vmul.f32 %v765, %v791
          %v793 = vpack.c.bf16 %v792, %v792
          %v795 = vperm.slane %v772, 0
          %v801 = vunpack.c.l.b16 %v768
          %v802 = vunpack.c.l.b16 %v769
          %v803 = vunpack.c.l.b16 %v770
          %v804 = vunpack.c.l.b16 %v771
          %v805 = vpack.c.b16 %v802, %v801
          %v806 = vpack.c.b16 %v804, %v803
          %v810 = vsel %vm661, %v793, 0
          %812 = vmatpush.bf16.msra.mxu0 0
          %813 = vmatpush.bf16.msra.mxu0 0
          %814 = vmatpush.bf16.msra.mxu0 0
          %815 = vmatpush.bf16.msra.mxu0 0
          %816 = vmatpush.bf16.msra.mxu0 0
          %817 = vmatpush.bf16.msra.mxu0 0
          %818 = vmatpush.bf16.msra.mxu0 %v806
          %819 = vmatpush.bf16.msra.mxu0 %v805
          %820 = vmatmul.bf16.gmra.mxu0 %v810
          %v821 = vpop.f32.mrf.mxu0
          %v822 = vadd.f32 %v795, %v821
          %v823 = vpop.f32.mrf.mxu0
          %824 = vdwg.mxu0
          %825 = vst.msk [vmem:[%s484] sm:$0xff] %vm661, %v822
        $region72: #{tpu_custom_call.1} parent=59 // pred_fallthru
          _
        %s826 = sand.u32 %s316, 1
        %s827 = scalar_lea.sflag [#allocation7], %s826
        %s828 = sand.u32 %s316, 1
        %s829 = smul.addr %s828, 8
        %s830 = scalar_lea.vmem [#allocation6], %s829
        // Predicated region
        $region73: #{tpu_custom_call.1} parent=59 // pred_check
          %p831 = pneg %p326
        $region74: #{tpu_custom_call.1} parent=59 // pred_check_branch
          %833 = sbr.rel (%p831) target = $region76
        $region75: #{tpu_custom_call.1} parent=59 // pred_region
          %835 = vsyncadd %s827, 0
          %s836 = smul.addr %s43, 8
          %s837 = scalar_lea.hbm %s12, %s836
          %s839 = sshll.u32 %s830, 4
          %s840 = int_to_ptr.vmem [resolvable:$true] %s839
          %s841 = sshll.u32 %s837, 4
          %s842 = int_to_ptr.hbm [resolvable:$true] %s841
          %844 = dma.vmem_to_hbm [thread:$0]  %s840, 128, %s842, %s827
        $region76: #{tpu_custom_call.1} parent=59 // pred_fallthru
          _
      $region60: #{tpu_custom_call.1} parent=5 // pred_fallthru
        _
      %p845 = scmp.le.s32.totalorder 2, %s34
      // Predicated region
      $region77: #{tpu_custom_call.1} parent=5 // pred_check
        %p846 = pneg %p845
      $region78: #{tpu_custom_call.1} parent=5 // pred_check_branch
        %848 = sbr.rel (%p846) target = $region80
      $region79: #{tpu_custom_call.1} parent=5 // pred_region
        %s849 = ssub.s32 %s34, 2
        // Predicated region
        $region81: #{tpu_custom_call.1} parent=79 // pred_check
          %p850 = pneg %p332
        $region82: #{tpu_custom_call.1} parent=79 // pred_check_branch
          %852 = sbr.rel (%p850) target = $region84
        $region83: #{tpu_custom_call.1} parent=79 // pred_region
          %s853 = sand.u32 %s317, 1
          %s854 = scalar_lea.sflag [#allocation7], %s853
          %s855 = sand.u32 %s317, 1
          %s856 = smul.addr %s855, 8
          %s857 = scalar_lea.vmem [#allocation6], %s856
          %859 = dma.done %s854, 128
        $region84: #{tpu_custom_call.1} parent=79 // pred_fallthru
          _
      $region80: #{tpu_custom_call.1} parent=5 // pred_fallthru
        _
    $region6: #{tpu_custom_call.1} parent=1 // loop_footer
      %s38 = sadd.s32 1, %s34
    $region7: #{tpu_custom_call.1} parent=1 // loop_footer_branch
      %33 = sbr.rel target = $region3
    $region8: #{tpu_custom_call.1} parent=1 // loop_exit
      _
    %860 = vsyncpa [#allocation7], 1
    %s861 = scalar_lea.sflag [#allocation7], 1
    %862 = vsyncpa %s861, 1

</llo_original>
